<compile_context>
chip_gen: v7x
topology: tpu7x:2x2x1
jax: 0.10.0
libtpu: 0.0.40
codegen_flags: <defaults>
</compile_context>

<pallas_src>
import jax
import jax.numpy as jnp
from jax import lax
from jax.experimental import pallas as pl
from jax.experimental.pallas import tpu as pltpu

EPS = 1e-5


# ----------------------------- Pallas kernels ------------------------------

def _mish(y):
    # y * tanh(softplus(y)) with tanh(softplus(y)) = 1 - 2/((1+e^y)^2 + 1):
    # a single EUP transcendental (exp) instead of exp + log + tanh.
    t = jnp.exp(jnp.minimum(y, 20.0))            # result is 1.0 beyond clamp
    return y * (1.0 - 2.0 / (t * (t + 2.0) + 2.0))


def _conv_bn_mish_kernel(x_ref, w_ref, scale_ref, bias_ref, o_ref):
    # x: (KC, TM)  w: (Cout, KC)  scale/bias: (Cout, 1)  o: (Cout, TM)
    y = jnp.dot(w_ref[...], x_ref[...], preferred_element_type=jnp.float32)
    y = y * scale_ref[...] + bias_ref[...]       # folded BatchNorm
    o_ref[...] = _mish(y).astype(o_ref.dtype)


def _conv_bn_mish_res_kernel(x_ref, w_ref, scale_ref, bias_ref, res_ref, o_ref):
    # Same as above plus the fused Resblock residual add (x + block(x)).
    y = jnp.dot(w_ref[...], x_ref[...], preferred_element_type=jnp.float32)
    y = y * scale_ref[...] + bias_ref[...]
    o_ref[...] = (_mish(y) + res_ref[...]).astype(o_ref.dtype)


def _dual_conv_bn_mish_kernel(xa_ref, xb_ref, wa_ref, wb_ref,
                              scale_ref, bias_ref, o_ref):
    # Fused torch.cat([xa, xb], channel-dim) followed by a 1x1 conv:
    #   Wa @ xa + Wb @ xb  (concat weight split along Cin).
    y = jnp.dot(wa_ref[...], xa_ref[...], preferred_element_type=jnp.float32)
    y = y + jnp.dot(wb_ref[...], xb_ref[...], preferred_element_type=jnp.float32)
    y = y * scale_ref[...] + bias_ref[...]
    o_ref[...] = _mish(y).astype(o_ref.dtype)


# ------------------------------ JAX glue -----------------------------------

def _round_up(x, m):
    return ((x + m - 1) // m) * m


def _fold_bn(p):
    inv_std = 1.0 / jnp.sqrt(p["var"] + EPS)
    scale = p["gamma"] * inv_std
    bias = p["beta"] - p["mean"] * scale
    return scale, bias


def _fused_conv_call(x_slabs, weights, scale, bias, residual=None):
    """Conv+BN+Mish on channel-first slabs.

    x_slabs[i]: (Ci, M)   weights[i]: (Cout, Ci)   residual: (Cout, M) or None.
    Returns (Cout, M).
    """
    M = x_slabs[0].shape[1]
    Cout = weights[0].shape[0]

    # Tile the lane axis M.  Budget double-buffered tiles comfortably inside
    # scoped VMEM (v7x only has 64 MiB physical / 32 MiB scoped default).
    cols = sum(x.shape[0] for x in x_slabs) + Cout
    cols += Cout if residual is not None else 0
    tm_cap = max(128, (24 * 1024 * 1024 // (8 * cols)) // 128 * 128)
    TM = min(_round_up(M, 128), 1024, tm_cap)
    Mp = _round_up(M, TM)
    grid = (Mp // TM,)

    def pad_m(a):
        return a if Mp == M else jnp.pad(a, ((0, 0), (0, Mp - M)))

    args, in_specs = [], []
    for x in x_slabs:                                      # tiled along lanes
        args.append(pad_m(x))
        in_specs.append(pl.BlockSpec((x.shape[0], TM), lambda i: (0, i)))
    for w in weights:                                      # VMEM-resident
        args.append(w)
        in_specs.append(pl.BlockSpec(w.shape, lambda i: (0, 0)))
    args += [scale.reshape(Cout, 1), bias.reshape(Cout, 1)]
    in_specs += [pl.BlockSpec((Cout, 1), lambda i: (0, 0))] * 2
    if residual is not None:
        args.append(pad_m(residual))
        in_specs.append(pl.BlockSpec((Cout, TM), lambda i: (0, i)))

    if len(x_slabs) == 2:
        kernel = _dual_conv_bn_mish_kernel
    elif residual is not None:
        kernel = _conv_bn_mish_res_kernel
    else:
        kernel = _conv_bn_mish_kernel

    out = pl.pallas_call(
        kernel,
        grid=grid,
        in_specs=in_specs,
        out_specs=pl.BlockSpec((Cout, TM), lambda i: (0, i)),
        out_shape=jax.ShapeDtypeStruct((Cout, Mp), jnp.float32),
        compiler_params=pltpu.CompilerParams(dimension_semantics=("parallel",)),
    )(*args)
    return out[:, :M]


def _im2col(x, ksize, stride):
    """x: (C, N, H, W) -> taps (ksize*ksize*C, N*Ho*Wo); tap order (ky,kx,c)."""
    C, N, H, W = x.shape
    pad = ksize // 2
    xp = jnp.pad(x, ((0, 0), (0, 0), (pad, pad), (pad, pad)))
    Ho = (H + 2 * pad - ksize) // stride + 1
    Wo = (W + 2 * pad - ksize) // stride + 1
    taps = []
    for ky in range(ksize):
        for kx in range(ksize):
            win = lax.slice(
                xp, (0, 0, ky, kx),
                (C, N, ky + (Ho - 1) * stride + 1, kx + (Wo - 1) * stride + 1),
                (1, 1, stride, stride))
            taps.append(win.reshape(C, N * Ho * Wo))
    return jnp.concatenate(taps, axis=0), Ho, Wo


def basic_conv(x, params, stride=1, residual=None):
    """BasicConv on a channels-first (C, N, H, W) activation."""
    Cout, kh, kw, Cin = params["w"].shape
    C, N, H, W = x.shape
    scale, bias = _fold_bn(params)
    if kh == 1 and stride == 1:
        # 1x1 conv: the activation slab IS the GEMM input (no im2col).
        x_slab, Ho, Wo = x.reshape(Cin, N * H * W), H, W
        w2 = params["w"].reshape(Cout, Cin)
    else:
        # TODO(synk): for large resolutions, replace im2col with an in-kernel
        # direct conv over a halo'd row band to avoid the 9x HBM tap traffic.
        x_slab, Ho, Wo = _im2col(x, kh, stride)
        w2 = params["w"].reshape(Cout, kh * kw * Cin)
    res = None if residual is None else residual.reshape(Cout, N * Ho * Wo)
    out = _fused_conv_call([x_slab], [w2], scale, bias, residual=res)
    return out.reshape(Cout, N, Ho, Wo)


def fused_split_convs(x, p0, p1):
    """split_conv0 and split_conv1 share the same input -> one kernel."""
    C, N, H, W = x.shape
    c0 = p0["w"].shape[0]
    c1 = p1["w"].shape[0]
    cin = p0["w"].shape[3]
    w = jnp.concatenate(
        [p0["w"].reshape(c0, cin), p1["w"].reshape(c1, cin)], axis=0)
    s0, b0 = _fold_bn(p0)
    s1, b1 = _fold_bn(p1)
    out = _fused_conv_call([x.reshape(cin, N * H * W)], [w],
                           jnp.concatenate([s0, s1]),
                           jnp.concatenate([b0, b1]))
    x0 = out[:c0].reshape(c0, N, H, W)
    x1 = out[c0:].reshape(c1, N, H, W)
    return x0, x1


def fused_concat_conv(x1, x0, params):
    """torch.cat([x1, x0], dim=1) + 1x1 concat_conv fused into one kernel."""
    Cout, _, _, cin_total = params["w"].shape
    C1, N, H, W = x1.shape
    C0 = x0.shape[0]
    w = params["w"].reshape(Cout, cin_total)
    scale, bias = _fold_bn(params)
    out = _fused_conv_call(
        [x1.reshape(C1, N * H * W), x0.reshape(C0, N * H * W)],
        [w[:, :C1], w[:, C1:]], scale, bias)
    return out.reshape(Cout, N, H, W)


# ---------------------------- parameter setup ------------------------------

def _init_basic_conv(key, cin, cout, k):
    kw, kg, kb, km, kv = jax.random.split(key, 5)
    return {
        "w": jax.random.normal(kw, (cout, k, k, cin), jnp.float32)
             * (1.0 / (k * k * cin) ** 0.5),
        "gamma": 1.0 + 0.1 * jax.random.normal(kg, (cout,), jnp.float32),
        "beta": 0.1 * jax.random.normal(kb, (cout,), jnp.float32),
        "mean": 0.1 * jax.random.normal(km, (cout,), jnp.float32),
        "var": 0.5 + jax.random.uniform(kv, (cout,), jnp.float32),
    }


def init_resblock_body(key, in_channels, out_channels, num_blocks, first):
    keys = jax.random.split(key, 8 + 2 * num_blocks)
    p = {"first": first}
    p["downsample"] = _init_basic_conv(keys[0], in_channels, out_channels, 3)
    if first:
        p["split0"] = _init_basic_conv(keys[1], out_channels, out_channels, 1)
        p["split1"] = _init_basic_conv(keys[2], out_channels, out_channels, 1)
        p["res_blocks"] = [{
            "conv1": _init_basic_conv(keys[3], out_channels, out_channels // 2, 1),
            "conv2": _init_basic_conv(keys[4], out_channels // 2, out_channels, 3),
        }]
        p["blocks_out"] = _init_basic_conv(keys[5], out_channels, out_channels, 1)
        p["concat"] = _init_basic_conv(keys[6], out_channels * 2, out_channels, 1)
    else:
        c = out_channels // 2
        p["split0"] = _init_basic_conv(keys[1], out_channels, c, 1)
        p["split1"] = _init_basic_conv(keys[2], out_channels, c, 1)
        p["res_blocks"] = [
            {"conv1": _init_basic_conv(keys[3 + 2 * i], c, c, 1),
             "conv2": _init_basic_conv(keys[4 + 2 * i], c, c, 3)}
            for i in range(num_blocks)]
        p["blocks_out"] = _init_basic_conv(keys[3 + 2 * num_blocks], c, c, 1)
        p["concat"] = _init_basic_conv(keys[4 + 2 * num_blocks],
                                       out_channels, out_channels, 1)
    return p


# ------------------------------- forward -----------------------------------

def resblock_body_forward(params, x_nchw):
    x = jnp.transpose(x_nchw, (1, 0, 2, 3))                  # NCHW -> CNHW
    x = basic_conv(x, params["downsample"], stride=2)        # 3x3, stride 2
    x0, x1 = fused_split_convs(x, params["split0"], params["split1"])
    for blk in params["res_blocks"]:                         # Resblock(s)
        t = basic_conv(x1, blk["conv1"])                     # 1x1
        x1 = basic_conv(t, blk["conv2"], residual=x1)        # 3x3 + fused skip
    x1 = basic_conv(x1, params["blocks_out"])                # 1x1
    out = fused_concat_conv(x1, x0, params["concat"])        # cat + 1x1 fused
    return jnp.transpose(out, (1, 0, 2, 3))                  # CNHW -> NCHW


# --------------------------- pure-JAX reference ----------------------------

def _ref_basic_conv(x_nchw, params, stride=1):
    Cout, kh, kw, Cin = params["w"].shape
    w_hwio = jnp.transpose(params["w"], (1, 2, 3, 0))        # (kh, kw, Cin, Cout)
    y = lax.conv_general_dilated(
        x_nchw, w_hwio, (stride, stride),
        [(kh // 2, kh // 2), (kw // 2, kw // 2)],
        dimension_numbers=("NCHW", "HWIO", "NCHW"),
        precision=lax.Precision.HIGHEST)
    scale, bias = _fold_bn(params)
    y = y * scale[None, :, None, None] + bias[None, :, None, None]
    return y * jnp.tanh(jax.nn.softplus(y))


def _ref_forward(params, x):
    x = _ref_basic_conv(x, params["downsample"], 2)
    x0 = _ref_basic_conv(x, params["split0"])
    x1 = _ref_basic_conv(x, params["split1"])
    for blk in params["res_blocks"]:
        t = _ref_basic_conv(x1, blk["conv1"])
        x1 = x1 + _ref_basic_conv(t, blk["conv2"])
    x1 = _ref_basic_conv(x1, params["blocks_out"])
    return _ref_basic_conv(jnp.concatenate([x1, x0], axis=1), params["concat"])


# --------------------------------- main -------------------------------------

if __name__ == "__main__":
    key = jax.random.PRNGKey(0)
    kx, kp1, kp2 = jax.random.split(key, 3)
    x = jax.random.normal(kx, (2, 4, 16, 16), jnp.float32)   # NCHW input

    # first=True branch (like the first CSP stage: in=4 -> out=8).
    p1 = init_resblock_body(kp1, 4, 8, 1, first=True)
    y1 = jax.block_until_ready(resblock_body_forward(p1, x))
    assert y1.shape == (2, 8, 8, 8)
    assert jnp.allclose(y1, _ref_forward(p1, x), atol=2e-3, rtol=2e-3)

    # first=False branch with num_blocks=2.
    p2 = init_resblock_body(kp2, 4, 8, 2, first=False)
    y2 = jax.block_until_ready(resblock_body_forward(p2, x))
    assert y2.shape == (2, 8, 8, 8)
    assert jnp.allclose(y2, _ref_forward(p2, x), atol=2e-3, rtol=2e-3)

    print("KERNEL_OK")
</pallas_src>

<mosaic_0001>
module attributes {stable_mosaic.version = 11 : i64} {
  func.func @_conv_bn_mish_kernel(%arg0: i32, %arg1: memref<36x128xf32, #tpu.memory_space<vmem>>, %arg2: memref<8x36xf32, #tpu.memory_space<vmem>>, %arg3: memref<8x1xf32, #tpu.memory_space<vmem>>, %arg4: memref<8x1xf32, #tpu.memory_space<vmem>>, %arg5: memref<8x128xf32, #tpu.memory_space<vmem>>) attributes {dimension_semantics = [#tpu.dimension_semantics<parallel>], iteration_bounds = array<i64: 1>, scalar_prefetch = 0 : i64, scratch_operands = 0 : i64, tpu.core_type = #tpu.core_type<tc>, window_params = [{transform_indices = @transform_0, window_bounds = array<i64: 36, 128>}, {pipeline_mode = #tpu.pipeline_mode<synchronous>, transform_indices = @transform_1, window_bounds = array<i64: 8, 36>}, {pipeline_mode = #tpu.pipeline_mode<synchronous>, transform_indices = @transform_2, window_bounds = array<i64: 8, 1>}, {pipeline_mode = #tpu.pipeline_mode<synchronous>, transform_indices = @transform_3, window_bounds = array<i64: 8, 1>}, {transform_indices = @transform_4, window_bounds = array<i64: 8, 128>}]} {
    %c0 = arith.constant 0 : index
    %c0_0 = arith.constant 0 : index
    %0 = vector.load %arg2[%c0, %c0_0] : memref<8x36xf32, #tpu.memory_space<vmem>>, vector<8x36xf32>
    %c0_1 = arith.constant 0 : index
    %c0_2 = arith.constant 0 : index
    %1 = vector.load %arg1[%c0_1, %c0_2] : memref<36x128xf32, #tpu.memory_space<vmem>>, vector<36x128xf32>
    %cst = arith.constant dense<0.000000e+00> : vector<8x128xf32>
    %2 = tpu.matmul %0, %1, %cst {dimension_numbers = #tpu.dot_dimension_numbers<[1], [0], [0], [1], [0, 0, 1, 1], [], []>} : vector<8x36xf32>, vector<36x128xf32>, vector<8x128xf32> -> vector<8x128xf32>
    %c0_3 = arith.constant 0 : index
    %c0_4 = arith.constant 0 : index
    %3 = vector.load %arg3[%c0_3, %c0_4] : memref<8x1xf32, #tpu.memory_space<vmem>>, vector<8x1xf32>
    %4 = vector.broadcast %3 : vector<8x1xf32> to vector<8x128xf32>
    %5 = arith.mulf %2, %4 : vector<8x128xf32>
    %c0_5 = arith.constant 0 : index
    %c0_6 = arith.constant 0 : index
    %6 = vector.load %arg4[%c0_5, %c0_6] : memref<8x1xf32, #tpu.memory_space<vmem>>, vector<8x1xf32>
    %7 = vector.broadcast %6 : vector<8x1xf32> to vector<8x128xf32>
    %8 = arith.addf %5, %7 : vector<8x128xf32>
    %cst_7 = arith.constant 2.000000e+01 : f32
    %9 = vector.broadcast %cst_7 : f32 to vector<8x128xf32>
    %10 = arith.minimumf %8, %9 : vector<8x128xf32>
    %11 = math.exp %10 : vector<8x128xf32>
    %cst_8 = arith.constant 2.000000e+00 : f32
    %12 = vector.broadcast %cst_8 : f32 to vector<8x128xf32>
    %13 = arith.addf %11, %12 : vector<8x128xf32>
    %14 = arith.mulf %11, %13 : vector<8x128xf32>
    %cst_9 = arith.constant 2.000000e+00 : f32
    %15 = vector.broadcast %cst_9 : f32 to vector<8x128xf32>
    %16 = arith.addf %14, %15 : vector<8x128xf32>
    %cst_10 = arith.constant 2.000000e+00 : f32
    %17 = vector.broadcast %cst_10 : f32 to vector<8x128xf32>
    %18 = arith.divf %17, %16 : vector<8x128xf32>
    %cst_11 = arith.constant 1.000000e+00 : f32
    %19 = vector.broadcast %cst_11 : f32 to vector<8x128xf32>
    %20 = arith.subf %19, %18 : vector<8x128xf32>
    %21 = arith.mulf %8, %20 : vector<8x128xf32>
    %c0_12 = arith.constant 0 : index
    %c0_13 = arith.constant 0 : index
    %22 = vector.load %arg5[%c0_12, %c0_13] : memref<8x128xf32, #tpu.memory_space<vmem>>, vector<8x128xf32>
    tpu.vector_store %arg5[%c0_12, %c0_13], %21 {strides = array<i32>} : memref<8x128xf32, #tpu.memory_space<vmem>>, vector<8x128xf32>,
    return
  }
  func.func @transform_0(%arg0: i32) -> (i32, i32) {
    %c0_i32 = arith.constant 0 : i32
    %c0_i32_0 = arith.constant 0 : i32
    return %c0_i32, %arg0 : i32, i32
  }
  func.func @transform_1(%arg0: i32) -> (i32, i32) {
    %c0_i32 = arith.constant 0 : i32
    %c0_i32_0 = arith.constant 0 : i32
    %c0_i32_1 = arith.constant 0 : i32
    return %c0_i32, %c0_i32_0 : i32, i32
  }
  func.func @transform_2(%arg0: i32) -> (i32, i32) {
    %c0_i32 = arith.constant 0 : i32
    %c0_i32_0 = arith.constant 0 : i32
    %c0_i32_1 = arith.constant 0 : i32
    return %c0_i32, %c0_i32_0 : i32, i32
  }
  func.func @transform_3(%arg0: i32) -> (i32, i32) {
    %c0_i32 = arith.constant 0 : i32
    %c0_i32_0 = arith.constant 0 : i32
    %c0_i32_1 = arith.constant 0 : i32
    return %c0_i32, %c0_i32_0 : i32, i32
  }
  func.func @transform_4(%arg0: i32) -> (i32, i32) {
    %c0_i32 = arith.constant 0 : i32
    %c0_i32_0 = arith.constant 0 : i32
    return %c0_i32, %arg0 : i32, i32
  }
}

</mosaic_0001>

<llo_original>
// kernel: tpu_custom_call.1
$region0: #{tpu_custom_call.1}
  #allocation0 [shape = 'u32[]', space=smem, size = 0x4, offset = 0x4, fixed_abs, tag = 'smem constant byte address 0x4 - core index']
  #allocation1 [shape = 'u32[144,128]{1,0:T(1,128)}', space=vmem, size = 0x12000, scoped, tag = 'internal scratch']
  %s0 = inlined_call_operand.hbm [shape: f32[36,128], index: 0, kind: input, shape index: {}]
  %s1 = inlined_call_operand.vmem [shape: f32[8,36], index: 1, kind: input, shape index: {}]
  %s2 = inlined_call_operand.vmem [shape: f32[8,1], index: 2, kind: input, shape index: {}]
  %s3 = inlined_call_operand.vmem [shape: f32[8,1], index: 3, kind: input, shape index: {}]
  %s4 = inlined_call_operand.hbm [shape: f32[8,128], index: 4, kind: output, shape index: {}]
  %s5 = sld [smem:[#allocation0]]
  $region30: #{tpu_custom_call.1} parent=0
    _
  %s7 = ssub.s32 1, %s5
  %s8 = scalar_select 0, %s7, %s5
  $region1: #{tpu_custom_call.1} parent=0
    #allocation2 [shape = 'u8[20480]{0}', space=vmem, size = 0x5000, scoped, tag = 'input window, operand 0, single buffered']
    #allocation3 [shape = 's32[1]{0}', space=sflag, size = 0x4, scoped, tag = 'scoped memory for tpu_custom_call.1']
    #allocation4 [shape = 's32[1]{0}', space=sflag, size = 0x4, scoped, tag = 'scoped memory for tpu_custom_call.1']
    #allocation5 [shape = 'u8[4096]{0}', space=vmem, size = 0x1000, scoped, tag = 'output window, operand 0, single buffered']
    %9 = vsyncpa [#allocation3], 0
    %10 = vsyncpa [#allocation4], 0
    // Predicated region
    $region2: #{tpu_custom_call.1} parent=1 // pred_check
      _
    $region3: #{tpu_custom_call.1} parent=1 // pred_check_branch
      %12 = sbr.rel (0) target = $region5
    $region4: #{tpu_custom_call.1} parent=1 // pred_region
      %s14 = ssub.s32 640, 640
      %15 = vsyncadd [#allocation3], %s14
      %s16 = sshll.u32 [#allocation2], 4
      %s17 = int_to_ptr.vmem [resolvable:$true] %s16
      %22 = dma.hbm_to_vmem [thread:$0]  %s0, 640, %s17, [#allocation3], 128, 128, 8
    $region5: #{tpu_custom_call.1} parent=1 // pred_fallthru
      _
    // Predicated region
    $region6: #{tpu_custom_call.1} parent=1 // pred_check
      _
    $region7: #{tpu_custom_call.1} parent=1 // pred_check_branch
      %24 = sbr.rel (0) target = $region9
    $region8: #{tpu_custom_call.1} parent=1 // pred_region
      _
    $region9: #{tpu_custom_call.1} parent=1 // pred_fallthru
      _
    // Predicated region
    $region10: #{tpu_custom_call.1} parent=1 // pred_check
      _
    $region11: #{tpu_custom_call.1} parent=1 // pred_check_branch
      %26 = sbr.rel (0) target = $region13
    $region12: #{tpu_custom_call.1} parent=1 // pred_region
      _
    $region13: #{tpu_custom_call.1} parent=1 // pred_fallthru
      _
    // Predicated region
    $region14: #{tpu_custom_call.1} parent=1 // pred_check
      _
    $region15: #{tpu_custom_call.1} parent=1 // pred_check_branch
      %28 = sbr.rel (0) target = $region17
    $region16: #{tpu_custom_call.1} parent=1 // pred_region
      _
    $region17: #{tpu_custom_call.1} parent=1 // pred_fallthru
      _
    // Predicated region
    $region18: #{tpu_custom_call.1} parent=1 // pred_check
      _
    $region19: #{tpu_custom_call.1} parent=1 // pred_check_branch
      %30 = sbr.rel (0) target = $region21
    $region20: #{tpu_custom_call.1} parent=1 // pred_region
      %31 = dma.done [#allocation3], 640
    $region21: #{tpu_custom_call.1} parent=1 // pred_fallthru
      _
    %v32 = vld [vmem:[%s1] sm:$0xff]
    %v33 = vld [vmem:[#allocation2] sm:$0xff]
    %v34 = vld [vmem:[#allocation2 + $0x8] sm:$0xff]
    %v35 = vld [vmem:[#allocation2 + $0x10] sm:$0xff]
    %v36 = vld [vmem:[#allocation2 + $0x18] sm:$0xff]
    %v37 = vld [vmem:[#allocation2 + $0x20] sm:$0xf]
    %vm38 = vcmask 293888
    %v40 = vsel %vm38, %v32, 0
    %vm42 = vcmask 1043456
    %v44 = vsel %vm42, %v37, 0
    %46 = vmatprep.subr.mxu0 0.0
    %47 = vmatpush1.msra.mxu0 %v33
    %48 = vmatprep.subr.mxu0 0.0
    %49 = vmatpush1.msra.mxu0 %v34
    %50 = vmatprep.subr.mxu0 0.0
    %51 = vmatpush1.msra.mxu0 %v35
    %52 = vmatprep.subr.mxu0 0.0
    %53 = vmatpush1.msra.mxu0 %v36
    %54 = vmatprep.subr.mxu0 0.0
    %55 = vmatpush1.msra.mxu0 %v44
    %56 = vmatprep.subr.mxu0 0.0
    %57 = vmatpush1.msra.mxu0 0.0
    %58 = vmatprep.subr.mxu0 0.0
    %59 = vmatpush1.msra.mxu0 0.0
    %60 = vmatprep.subr.mxu0 0.0
    %61 = vmatpush1.msra.mxu0 0.0
    %62 = vmatprep.subr.mxu0 0.0
    %63 = vmatpush1.msra.mxu0 0.0
    %64 = vmatprep.subr.mxu0 0.0
    %65 = vmatpush1.msra.mxu0 0.0
    %66 = vmatprep.subr.mxu0 0.0
    %67 = vmatpush1.msra.mxu0 0.0
    %68 = vmatprep.subr.mxu0 0.0
    %69 = vmatpush1.msra.mxu0 0.0
    %70 = vmatprep.subr.mxu0 0.0
    %71 = vmatpush1.msra.mxu0 0.0
    %72 = vmatprep.subr.mxu0 0.0
    %73 = vmatpush1.msra.mxu0 0.0
    %74 = vmatprep.subr.mxu0 0.0
    %75 = vmatpush1.msra.mxu0 0.0
    %76 = vmatprep.subr.mxu0 0.0
    %77 = vmatpush1.msra.mxu0 0.0
    %78 = vmatprep.subr.mxu0 0.0
    %79 = vmatpush1.msra.mxu0 0.0
    %80 = vmatprep.subr.mxu0 0.0
    %81 = vmatpush1.msra.mxu0 0.0
    %82 = vmatprep.subr.mxu0 0.0
    %83 = vmatpush1.msra.mxu0 0.0
    %84 = vmatprep.subr.mxu0 0.0
    %85 = vmatpush1.msra.mxu0 0.0
    %86 = vmatprep.subr.mxu0 0.0
    %87 = vmatpush1.msra.mxu0 0.0
    %88 = vmatprep.subr.mxu0 0.0
    %89 = vmatpush1.msra.mxu0 0.0
    %90 = vmatprep.subr.mxu0 0.0
    %91 = vmatpush1.msra.mxu0 0.0
    %92 = vmatprep.subr.mxu0 0.0
    %93 = vmatpush1.msra.mxu0 0.0
    %94 = vmatprep.subr.mxu0 0.0
    %95 = vmatpush1.msra.mxu0 0.0
    %96 = vmatprep.subr.mxu0 0.0
    %97 = vmatpush1.msra.mxu0 0.0
    %98 = vmatprep.subr.mxu0 0.0
    %99 = vmatpush1.msra.mxu0 0.0
    %100 = vmatprep.subr.mxu0 0.0
    %101 = vmatpush1.msra.mxu0 0.0
    %102 = vmatprep.subr.mxu0 0.0
    %103 = vmatpush1.msra.mxu0 0.0
    %104 = vmatprep.subr.mxu0 0.0
    %105 = vmatpush1.msra.mxu0 0.0
    %106 = vmatprep.subr.mxu0 0.0
    %107 = vmatpush1.msra.mxu0 0.0
    %108 = vmatprep.subr.mxu0 0.0
    %109 = vmatpush1.msra.mxu0 0.0
    %110 = vmatprep.mubr.f32.mxu0 0.0
    %111 = vmatmul.mubr.f32.gmra.mrb[0].mxu0 %v40
    %v112 = vpop.f32.mrb[0].mxu0
    %v113 = vadd.f32 0.0, %v112
    %v114 = vpop.f32.mrb[0].mxu0
    %115 = vdwg.mxu0
    %v116 = vld [vmem:[%s2] sm:$0xff]
    %118 = vset.pattern.permute.xlu0 0
    %119 = vperm.xlu0 %118, %v116
    %v120 = vpop.permute.xlu0 %119
    %v122 = vmul.f32 %v113, %v120
    %v123 = vld [vmem:[%s3] sm:$0xff]
    %125 = vset.pattern.permute.xlu0 0
    %126 = vperm.xlu0 %125, %v123
    %v127 = vpop.permute.xlu0 %126
    %v129 = vadd.f32 %v122, %v127
    %v130 = vmin.f32 %v129, 20.0
    %v131 = vmul.f32 %v130, 1.442695
    %v132 = vpow.pop %v131
    %v133 = vadd.f32 %v132, 2.0
    %v134 = vmul.f32 %v132, %v133
    %v135 = vadd.f32 %v134, 2.0
    %v136 = vrcp.pop %v135
    %v137 = vmul.f32 2.0, %v136
    %v138 = vsub.f32 1.0, %v137
    %v139 = vmul.f32 %v129, %v138
    %140 = vst [vmem:[#allocation5] sm:$0xff] %v139
    // Predicated region
    $region22: #{tpu_custom_call.1} parent=1 // pred_check
      _
    $region23: #{tpu_custom_call.1} parent=1 // pred_check_branch
      %142 = sbr.rel (0) target = $region25
    $region24: #{tpu_custom_call.1} parent=1 // pred_region
      %s144 = ssub.s32 128, 128
      %145 = vsyncadd [#allocation4], %s144
      %s147 = sshll.u32 [#allocation5], 4
      %s148 = int_to_ptr.vmem [resolvable:$true] %s147
      %150 = dma.vmem_to_hbm [thread:$0]  %s148, 128, %s4, [#allocation4]
    $region25: #{tpu_custom_call.1} parent=1 // pred_fallthru
      _
    // Predicated region
    $region26: #{tpu_custom_call.1} parent=1 // pred_check
      _
    $region27: #{tpu_custom_call.1} parent=1 // pred_check_branch
      %152 = sbr.rel (0) target = $region29
    $region28: #{tpu_custom_call.1} parent=1 // pred_region
      %153 = dma.done [#allocation4], 128
    $region29: #{tpu_custom_call.1} parent=1 // pred_fallthru
      _
    %154 = vsyncpa [#allocation3], 1
    %155 = vsyncpa [#allocation4], 1

</llo_original>
